<compile_context>
chip_gen: v7x
topology: tpu7x:2x2x1
jax: 0.10.0
libtpu: 0.0.40
codegen_flags: <defaults>
</compile_context>

<pallas_src>
import functools
import math

import jax
import jax.numpy as jnp
import numpy as np
from jax.experimental import pallas as pl
from jax.experimental.pallas import tpu as pltpu

_MAX_TILE_ROWS = 4096     # 128-lane rows per block -> 2 MiB f32 output block
_PALLAS_MIN_BATCH = 128   # below this a single fused XLA gather beats any pallas_call


def _sinusoidal_table_np(time_steps, dim):
    """Faithful float32 replica of the PyTorch __init__ table (host-side numpy)."""
    position = np.arange(time_steps, dtype=np.float32)[:, None]
    div = np.exp(-math.log(10000.0) * np.arange(0, dim, 2, dtype=np.float32) / np.float32(dim))
    emb = np.zeros((time_steps, dim), dtype=np.float32)
    emb[:, 0::2] = np.sin(position * div)
    emb[:, 1::2] = np.cos(position * div)
    return emb


def _freq_row_np(dim):
    """(1, 128) float32 constant: freq[l] = exp(-ln(1e4) * (2*((l % dim)//2)) / dim)."""
    d = np.arange(128, dtype=np.int64) % dim
    pair = (d - (d % 2)).astype(np.float32)
    freq = np.exp(-math.log(10000.0) * pair / np.float32(dim))
    return freq.astype(np.float32).reshape(1, 128)


def _pos_embed_kernel(coeff_ref, t_ref, out_ref, *, dim):
    """coeff_ref: (1, 128) f32 per-lane frequency (grid-resident constant).
    t_ref:     (rows, 128//dim) int32 timesteps, 128//dim batch entries packed per row.
    out_ref:   (rows, 128) f32, out[r, l] = sin/cos(t[r, l//dim] * freq[l % dim])."""
    rows = out_ref.shape[0]
    items = 128 // dim                                # batch entries per 128-lane row
    freq = coeff_ref[...]                             # (1, 128), sublane-broadcast in the mul
    lane = jax.lax.broadcasted_iota(jnp.int32, (rows, 128), 1)
    feat = lane & (dim - 1)                           # lane % dim (dim divides 128 -> power of 2)

    tvals = t_ref[...].astype(jnp.float32)            # (rows, items)
    tt = tvals[:, 0:1]                                # (rows, 1)
    if items > 1:
        shift = dim.bit_length() - 1                  # log2(dim)
        group = lane >> shift                         # which packed batch entry owns this lane
        for c in range(1, items):
            tt = jnp.where(group == c, tvals[:, c:c + 1], tt)

    ang = tt * freq                                   # (rows, 128), fully lane-dense
    # Explicit cos for odd features (no sin(x + pi/2) rewrite -> accurate at large angles).
    out_ref[...] = jnp.where((feat & 1) == 1, jnp.cos(ang), jnp.sin(ang))


def _position_embedding_pallas(t_idx, coeff, *, dim):
    """t_idx: (B,) int32 timesteps in [0, time_steps). Returns (B, dim) float32."""
    B = t_idx.shape[0]
    items = 128 // dim
    R = pl.cdiv(B, items)
    if R <= _MAX_TILE_ROWS:
        tile_rows, n_blocks = R, 1                    # single block == full array dims
    else:
        n_blocks = pl.cdiv(R, _MAX_TILE_ROWS)         # >= 2 -> both TensorCores on v7x
        tile_rows = ((pl.cdiv(R, n_blocks) + 7) // 8) * 8
    r_pad = tile_rows * n_blocks
    b_pad = r_pad * items
    if b_pad != B:
        t_idx = jnp.pad(t_idx, (0, b_pad - B))        # padded entries compute sin/cos(0*freq); sliced off
    t_packed = t_idx.reshape(r_pad, items)

    out_packed = pl.pallas_call(
        functools.partial(_pos_embed_kernel, dim=dim),
        out_shape=jax.ShapeDtypeStruct((r_pad, 128), jnp.float32),
        grid=(n_blocks,),
        in_specs=[
            pl.BlockSpec((1, 128), lambda r: (0, 0)),           # resident freq constant
            pl.BlockSpec((tile_rows, items), lambda r: (r, 0)),
        ],
        out_specs=pl.BlockSpec((tile_rows, 128), lambda r: (r, 0)),
        compiler_params=pltpu.CompilerParams(dimension_semantics=("parallel",)),
    )(coeff, t_packed)

    # Row-major (r_pad, 128) has the exact memory layout of (b_pad, dim): free metadata reshape.
    out = out_packed.reshape(b_pad, dim)
    if b_pad != B:
        out = out[:B]
    return out


class PositionEmbedding:
    """JAX/Pallas port of the PyTorch PositionEmbedding module."""

    def __init__(self, time_steps, dim):
        self.dim = dim
        self.time_steps = time_steps
        self.embedding = jnp.asarray(_sinusoidal_table_np(time_steps, dim))   # (T, dim) f32
        self._coeff = jnp.asarray(_freq_row_np(dim)) if (128 % dim == 0) else None

    def __call__(self, x, t, *, force_pallas=False):
        del x  # PyTorch only uses x for .to(x.device)
        B = t.shape[0]
        t_idx = t.reshape(B).astype(jnp.int32)
        # TODO(synk): indices are assumed in [0, time_steps); PyTorch raises on out-of-range
        # gather indices, while the Pallas path silently evaluates the analytic sin/cos.
        if self._coeff is not None and (force_pallas or B >= _PALLAS_MIN_BATCH):
            out = _position_embedding_pallas(t_idx, self._coeff, dim=self.dim)
        else:
            out = jnp.take(self.embedding, t_idx, axis=0)   # small-B fast path: one fused gather
        return out[:, :, None, None]


if __name__ == "__main__":
    TIME_STEPS, DIM, B = 100, 32, 2
    key = jax.random.PRNGKey(0)
    kx, kt, kt2, kt3 = jax.random.split(key, 4)
    x = jax.random.normal(kx, (B, 4, 16, 16), dtype=jnp.float32)   # unused in compute
    t = jax.random.randint(kt, (B, 1), 0, TIME_STEPS, dtype=jnp.int32)

    module = PositionEmbedding(TIME_STEPS, DIM)
    table = _sinusoidal_table_np(TIME_STEPS, DIM)
    ref = table[np.asarray(t).reshape(-1)][:, :, None, None]

    # 1) Shipped config (B=2): dispatches to the single-gather XLA fast path.
    out = jax.block_until_ready(module(x, t))
    assert out.shape == (B, DIM, 1, 1) and out.dtype == jnp.float32
    assert np.allclose(np.asarray(out), ref, atol=1e-4), "gather path mismatch"

    # 2) Same shapes, forced through the Pallas kernel (single block, block == full array).
    out_p = jax.block_until_ready(module(x, t, force_pallas=True))
    assert out_p.shape == (B, DIM, 1, 1) and out_p.dtype == jnp.float32
    assert np.allclose(np.asarray(out_p), ref, atol=1e-4), "pallas small-B mismatch"

    # 3) Large batch: gridded Pallas path (>=2 blocks -> both TensorCores on v7x).
    B2 = 20000
    t2 = jax.random.randint(kt2, (B2, 1), 0, TIME_STEPS, dtype=jnp.int32)
    out2 = jax.block_until_ready(module(x, t2))
    ref2 = table[np.asarray(t2).reshape(-1)][:, :, None, None]
    assert out2.shape == (B2, DIM, 1, 1)
    assert np.allclose(np.asarray(out2), ref2, atol=1e-4), "pallas large-B mismatch"

    # 4) Larger time range: explicit cos keeps odd features accurate at big angles.
    T3, B3 = 1000, 512
    module3 = PositionEmbedding(T3, DIM)
    table3 = _sinusoidal_table_np(T3, DIM)
    t3 = jax.random.randint(kt3, (B3, 1), 0, T3, dtype=jnp.int32)
    out3 = jax.block_until_ready(module3(x, t3))
    ref3 = table3[np.asarray(t3).reshape(-1)][:, :, None, None]
    assert out3.shape == (B3, DIM, 1, 1)
    assert np.allclose(np.asarray(out3), ref3, atol=2e-3), "pallas large-T mismatch"

    print("KERNEL_OK")
</pallas_src>

<mosaic_0001>
module attributes {stable_mosaic.version = 11 : i64} {
  func.func @_pos_embed_kernel(%arg0: i32, %arg1: memref<1x128xf32, #tpu.memory_space<vmem>>, %arg2: memref<1x4xi32, #tpu.memory_space<vmem>>, %arg3: memref<1x128xf32, #tpu.memory_space<vmem>>) attributes {dimension_semantics = [#tpu.dimension_semantics<parallel>], iteration_bounds = array<i64: 1>, scalar_prefetch = 0 : i64, scratch_operands = 0 : i64, tpu.core_type = #tpu.core_type<tc>, window_params = [{pipeline_mode = #tpu.pipeline_mode<synchronous>, transform_indices = @transform_0, window_bounds = array<i64: 1, 128>}, {transform_indices = @transform_1, window_bounds = array<i64: 1, 4>}, {transform_indices = @transform_2, window_bounds = array<i64: 1, 128>}]} {
    %c0 = arith.constant 0 : index
    %c0_0 = arith.constant 0 : index
    %0 = vector.load %arg1[%c0, %c0_0] : memref<1x128xf32, #tpu.memory_space<vmem>>, vector<1x128xf32>
    %1 = tpu.iota {dimensions = array<i32: 1>} : vector<1x128xi32>
    %c31_i32 = arith.constant 31 : i32
    %2 = vector.broadcast %c31_i32 : i32 to vector<1x128xi32>
    %3 = arith.andi %1, %2 : vector<1x128xi32>
    %c0_1 = arith.constant 0 : index
    %c0_2 = arith.constant 0 : index
    %4 = vector.load %arg2[%c0_1, %c0_2] : memref<1x4xi32, #tpu.memory_space<vmem>>, vector<1x4xi32>
    %5 = arith.sitofp %4 : vector<1x4xi32> to vector<1x4xf32>
    %6 = vector.extract_strided_slice %5 {offsets = [0, 0], sizes = [1, 1], strides = [1, 1]} : vector<1x4xf32> to vector<1x1xf32>
    %c5_i32 = arith.constant 5 : i32
    %7 = vector.broadcast %c5_i32 : i32 to vector<1x128xi32>
    %8 = arith.shrsi %1, %7 : vector<1x128xi32>
    %c1_i32 = arith.constant 1 : i32
    %9 = vector.broadcast %c1_i32 : i32 to vector<1x128xi32>
    %10 = arith.cmpi eq, %8, %9 : vector<1x128xi32>
    %11 = vector.extract_strided_slice %5 {offsets = [0, 1], sizes = [1, 1], strides = [1, 1]} : vector<1x4xf32> to vector<1x1xf32>
    %12 = vector.shape_cast %11 : vector<1x1xf32> to vector<1x1xf32>
    %13 = vector.broadcast %12 : vector<1x1xf32> to vector<1x128xf32>
    %14 = vector.shape_cast %6 : vector<1x1xf32> to vector<1x1xf32>
    %15 = vector.broadcast %14 : vector<1x1xf32> to vector<1x128xf32>
    %16 = arith.select %10, %13, %15 : vector<1x128xi1>, vector<1x128xf32>
    %c2_i32 = arith.constant 2 : i32
    %17 = vector.broadcast %c2_i32 : i32 to vector<1x128xi32>
    %18 = arith.cmpi eq, %8, %17 : vector<1x128xi32>
    %19 = vector.extract_strided_slice %5 {offsets = [0, 2], sizes = [1, 1], strides = [1, 1]} : vector<1x4xf32> to vector<1x1xf32>
    %20 = vector.shape_cast %19 : vector<1x1xf32> to vector<1x1xf32>
    %21 = vector.broadcast %20 : vector<1x1xf32> to vector<1x128xf32>
    %22 = arith.select %18, %21, %16 : vector<1x128xi1>, vector<1x128xf32>
    %c3_i32 = arith.constant 3 : i32
    %23 = vector.broadcast %c3_i32 : i32 to vector<1x128xi32>
    %24 = arith.cmpi eq, %8, %23 : vector<1x128xi32>
    %25 = vector.extract_strided_slice %5 {offsets = [0, 3], sizes = [1, 1], strides = [1, 1]} : vector<1x4xf32> to vector<1x1xf32>
    %26 = vector.shape_cast %25 : vector<1x1xf32> to vector<1x1xf32>
    %27 = vector.broadcast %26 : vector<1x1xf32> to vector<1x128xf32>
    %28 = arith.select %24, %27, %22 : vector<1x128xi1>, vector<1x128xf32>
    %29 = arith.mulf %28, %0 : vector<1x128xf32>
    %c1_i32_3 = arith.constant 1 : i32
    %30 = vector.broadcast %c1_i32_3 : i32 to vector<1x128xi32>
    %31 = arith.andi %3, %30 : vector<1x128xi32>
    %c1_i32_4 = arith.constant 1 : i32
    %32 = vector.broadcast %c1_i32_4 : i32 to vector<1x128xi32>
    %33 = arith.cmpi eq, %31, %32 : vector<1x128xi32>
    %34 = math.cos %29 : vector<1x128xf32>
    %35 = math.sin %29 : vector<1x128xf32>
    %36 = arith.select %33, %34, %35 : vector<1x128xi1>, vector<1x128xf32>
    %c0_5 = arith.constant 0 : index
    %c0_6 = arith.constant 0 : index
    %37 = vector.load %arg3[%c0_5, %c0_6] : memref<1x128xf32, #tpu.memory_space<vmem>>, vector<1x128xf32>
    tpu.vector_store %arg3[%c0_5, %c0_6], %36 {strides = array<i32>} : memref<1x128xf32, #tpu.memory_space<vmem>>, vector<1x128xf32>,
    return
  }
  func.func @transform_0(%arg0: i32) -> (i32, i32) {
    %c0_i32 = arith.constant 0 : i32
    %c0_i32_0 = arith.constant 0 : i32
    %c0_i32_1 = arith.constant 0 : i32
    return %c0_i32, %c0_i32_0 : i32, i32
  }
  func.func @transform_1(%arg0: i32) -> (i32, i32) {
    %c0_i32 = arith.constant 0 : i32
    %c0_i32_0 = arith.constant 0 : i32
    return %arg0, %c0_i32 : i32, i32
  }
  func.func @transform_2(%arg0: i32) -> (i32, i32) {
    %c0_i32 = arith.constant 0 : i32
    %c0_i32_0 = arith.constant 0 : i32
    return %arg0, %c0_i32 : i32, i32
  }
}

</mosaic_0001>

<llo_original>
// kernel: tpu_custom_call.1
$region0: #{tpu_custom_call.1}
  #allocation0 [shape = 'u32[]', space=smem, size = 0x4, offset = 0x4, fixed_abs, tag = 'smem constant byte address 0x4 - core index']
  #allocation1 [shape = 'u32[144,128]{1,0:T(1,128)}', space=vmem, size = 0x12000, scoped, tag = 'internal scratch']
  %s0 = inlined_call_operand.hbm [shape: f32[1,128], index: 0, kind: input, shape index: {}]
  %s1 = inlined_call_operand.vmem [shape: s32[1,4], index: 1, kind: input, shape index: {}]
  %s2 = inlined_call_operand.hbm [shape: f32[1,128], index: 2, kind: output, shape index: {}]
  %s3 = sld [smem:[#allocation0]]
  $region22: #{tpu_custom_call.1} parent=0
    _
  %s5 = ssub.s32 1, %s3
  %s6 = scalar_select 0, %s5, %s3
  $region1: #{tpu_custom_call.1} parent=0
    #allocation2 [shape = 'u8[512]{0}', space=vmem, size = 0x400, scoped, tag = 'input window, operand 0, single buffered']
    #allocation3 [shape = 's32[1]{0}', space=sflag, size = 0x4, scoped, tag = 'scoped memory for tpu_custom_call.1']
    #allocation4 [shape = 's32[1]{0}', space=sflag, size = 0x4, scoped, tag = 'scoped memory for tpu_custom_call.1']
    #allocation5 [shape = 'u8[512]{0}', space=vmem, size = 0x400, scoped, tag = 'output window, operand 0, single buffered']
    %7 = vsyncpa [#allocation3], 0
    %8 = vsyncpa [#allocation4], 0
    // Predicated region
    $region2: #{tpu_custom_call.1} parent=1 // pred_check
      _
    $region3: #{tpu_custom_call.1} parent=1 // pred_check_branch
      %10 = sbr.rel (0) target = $region5
    $region4: #{tpu_custom_call.1} parent=1 // pred_region
      %s12 = ssub.s32 16, 16
      %13 = vsyncadd [#allocation3], %s12
      %s15 = sshll.u32 [#allocation2], 4
      %s16 = int_to_ptr.vmem [resolvable:$true] %s15
      %18 = dma.hbm_to_vmem [thread:$0]  %s0, 16, %s16, [#allocation3]
    $region5: #{tpu_custom_call.1} parent=1 // pred_fallthru
      _
    // Predicated region
    $region6: #{tpu_custom_call.1} parent=1 // pred_check
      _
    $region7: #{tpu_custom_call.1} parent=1 // pred_check_branch
      %20 = sbr.rel (0) target = $region9
    $region8: #{tpu_custom_call.1} parent=1 // pred_region
      _
    $region9: #{tpu_custom_call.1} parent=1 // pred_fallthru
      _
    // Predicated region
    $region10: #{tpu_custom_call.1} parent=1 // pred_check
      _
    $region11: #{tpu_custom_call.1} parent=1 // pred_check_branch
      %22 = sbr.rel (0) target = $region13
    $region12: #{tpu_custom_call.1} parent=1 // pred_region
      %23 = dma.done [#allocation3], 16
    $region13: #{tpu_custom_call.1} parent=1 // pred_fallthru
      _
    %v24 = vld [vmem:[#allocation2] sm:$0x1]
    %v25 = vlaneseq
    %v26 = vand.u32 %v25, 127
    %v27 = vand.u32 %v26, 31
    %v28 = vld [vmem:[%s1] sm:$0x1]
    %v29 = vcvt.s32.f32 %v28
    %v30 = vshra.s32 %v26, 5
    %vm31 = vcmp.eq.s32.totalorder %v30, 1
    %33 = vset.pattern.permute.xlu0 1
    %34 = vperm.xlu0 %33, %v29
    %v35 = vpop.permute.xlu0 %34
    %v37 = vlaneseq
    %v38 = vshrl.u32 %v37, 7
    %v39 = vsub.s32 0, %v38
    %v40 = vrot.slane %v35, %v39
    %41 = vset.pattern.permute.xlu0 0
    %42 = vperm.xlu0 %41, %v29
    %v43 = vpop.permute.xlu0 %42
    %v45 = vlaneseq
    %v46 = vshrl.u32 %v45, 7
    %v47 = vsub.s32 0, %v46
    %v48 = vrot.slane %v43, %v47
    %v49 = vsel %vm31, %v40, %v48
    %vm50 = vcmp.eq.s32.totalorder %v30, 2
    %51 = vset.pattern.permute.xlu0 2
    %52 = vperm.xlu0 %51, %v29
    %v53 = vpop.permute.xlu0 %52
    %v55 = vlaneseq
    %v56 = vshrl.u32 %v55, 7
    %v57 = vsub.s32 0, %v56
    %v58 = vrot.slane %v53, %v57
    %v59 = vsel %vm50, %v58, %v49
    %vm60 = vcmp.eq.s32.totalorder %v30, 3
    %61 = vset.pattern.permute.xlu0 3
    %62 = vperm.xlu0 %61, %v29
    %v63 = vpop.permute.xlu0 %62
    %v65 = vlaneseq
    %v66 = vshrl.u32 %v65, 7
    %v67 = vsub.s32 0, %v66
    %v68 = vrot.slane %v63, %v67
    %v69 = vsel %vm60, %v68, %v59
    %v70 = vmul.f32 %v69, %v24
    %v71 = vand.u32 %v27, 1
    %vm72 = vcmp.eq.s32.totalorder %v71, 1
    %v73 = vand.u32 2147483647, %v70
    %vm74 = vcmp.le.f32.partialorder %v73, 0.7853982
    %vm75 = vcmp.lt.s32.totalorder %v70, 0
    %v76 = vand.u32 %v70, 2139095040
    %v77 = vshrl.u32 %v76, 23
    %v78 = vsub.s32 %v77, 127
    %v79 = vand.u32 2147483647, %v70
    %v80 = vand.u32 %v79, 8388607
    %v81 = vor.u32 %v80, 8388608
    %v82 = vsub.s32 0, %v81
    %v83 = vadd.s32 %v78, 1
    %vm84 = vcmp.gt.s32.totalorder %v83, 0
    %v85 = vsel %vm84, %v83, 0
    %v86 = vshrl.u32 %v85, 5
    %v87 = vand.u32 %v85, 31
    %v88 = vsub.s32 32, %v87
    %v89 = vshrl.u32 683565275, %v88
    %v90 = vshll.u32 683565275, %v87
    %v91 = vshrl.u32 2475754826, %v88
    %v92 = vor.u32 %v90, %v91
    %v93 = vshll.u32 2475754826, %v87
    %v94 = vshrl.u32 2131351028, %v88
    %v95 = vor.u32 %v93, %v94
    %v96 = vshll.u32 2131351028, %v87
    %v97 = vshrl.u32 2102212464, %v88
    %v98 = vor.u32 %v96, %v97
    %v99 = vshll.u32 2102212464, %v87
    %v100 = vshrl.u32 920167782, %v88
    %v101 = vor.u32 %v99, %v100
    %v102 = vshll.u32 920167782, %v87
    %v103 = vshrl.u32 1326507024, %v88
    %v104 = vor.u32 %v102, %v103
    %vm105 = vcmp.lt.s32.totalorder %v86, 1
    %vm106 = vcmp.lt.s32.totalorder %v86, 2
    %vm107 = vcmp.lt.s32.totalorder %v86, 3
    %vm108 = vcmp.lt.s32.totalorder %v86, 4
    %v109 = vsel %vm105, %v89, %v92
    %v110 = vsel %vm108, %v98, 2102212464
    %v111 = vsel %vm107, %v95, %v110
    %v112 = vsel %vm106, %v109, %v111
    %v113 = vsel %vm105, %v92, %v95
    %v114 = vsel %vm108, %v101, 920167782
    %v115 = vsel %vm107, %v98, %v114
    %v116 = vsel %vm106, %v113, %v115
    %v117 = vsel %vm105, %v95, %v98
    %v118 = vsel %vm108, %v104, 1326507024
    %v119 = vsel %vm107, %v101, %v118
    %v120 = vsel %vm106, %v117, %v119
    %v121 = vshll.u32 %v81, 8
    %v122 = vmul.u32.u64.compose %v121, %v120
    %v123 = vextract.low.u32 %v122
    %v124 = vextract.high.u32 %v122
    %v125 = vmul.u32.u64.compose %v121, %v116
    %v126 = vextract.low.u32 %v125
    %v127 = vextract.high.u32 %v125
    %v128 = vmul.u32 %v121, %v112
    %v129 = vadd.s32 %v124, %v126
    %vm130 = vc.u32 %v124, %v126
    %v131 = vadd.s32 %v127, 1
    %v132 = vsel %vm130, %v131, %v127
    %v133 = vadd.s32 %v128, %v132
    %v134 = vadd.s32 %v133, 536870912
    %v135 = vshrl.u32 %v134, 30
    %v136 = vshll.u32 %v135, 30
    %v137 = vsub.s32 %v133, %v136
    %vm138 = vcmp.lt.s32.totalorder %v137, 0
    %v139 = vsub.s32 0, %v137
    %v140 = vsel %vm138, %v139, %v137
    %v141 = vclz %v140
    %v142 = vsub.s32 %v141, 2
    %vm143 = vcmp.gt.s32.totalorder 0, %v142
    %v144 = vsel %vm143, 0, %v142
    %v145 = vsub.s32 32, %v144
    %v146 = vshll.u32 %v137, %v144
    %v147 = vshrl.u32 %v129, %v145
    %v148 = vor.u32 %v146, %v147
    %v149 = vsub.s32 4294967266, %v144
    %v150 = vadd.s32 %v149, 127
    %v151 = vshll.u32 %v150, 23
    %v152 = vor.u32 4788187, %v151
    %v153 = vand.u32 2147483647, %v152
    %v155 = vcvt.s32.f32 %v148
    %v156 = vmul.f32 %v155, %v153
    %v157 = vxor.u32 %v156, 2147483648
    %v158 = vsel %vm75, %v157, %v156
    %v159 = vsub.s32 4, %v135
    %v160 = vsel %vm75, %v159, %v135
    %v161 = vsel %vm74, %v70, %v158
    %v162 = vsel %vm74, 0, %v160
    %v163 = vcosq.f32.pop %v161
    %v164 = vsinq.f32.pop %v161
    %vm165 = vweird.f32 %v70
    %v166 = vand.u32 %v162, 3
    %vm167 = vcmp.lt.s32.totalorder %v166, 2
    %vm168 = vcmp.eq.s32.totalorder %v166, 0
    %v169 = vxor.u32 %v164, 2147483648
    %v170 = vsel %vm168, %v163, %v169
    %vm171 = vcmp.eq.s32.totalorder %v166, 2
    %v172 = vxor.u32 %v163, 2147483648
    %v173 = vsel %vm171, %v172, %v164
    %v174 = vsel %vm167, %v170, %v173
    %v175 = vsel %vm165, nan, %v174
    %v176 = vand.u32 2147483647, %v70
    %vm177 = vcmp.le.f32.partialorder %v176, 0.7853982
    %vm178 = vcmp.lt.s32.totalorder %v70, 0
    %v179 = vand.u32 %v70, 2139095040
    %v180 = vshrl.u32 %v179, 23
    %v181 = vsub.s32 %v180, 127
    %v182 = vand.u32 2147483647, %v70
    %v183 = vand.u32 %v182, 8388607
    %v184 = vor.u32 %v183, 8388608
    %v185 = vsub.s32 0, %v184
    %v186 = vadd.s32 %v181, 1
    %vm187 = vcmp.gt.s32.totalorder %v186, 0
    %v188 = vsel %vm187, %v186, 0
    %v189 = vshrl.u32 %v188, 5
    %v190 = vand.u32 %v188, 31
    %v191 = vsub.s32 32, %v190
    %v192 = vshrl.u32 683565275, %v191
    %v193 = vshll.u32 683565275, %v190
    %v194 = vshrl.u32 2475754826, %v191
    %v195 = vor.u32 %v193, %v194
    %v196 = vshll.u32 2475754826, %v190
    %v197 = vshrl.u32 2131351028, %v191
    %v198 = vor.u32 %v196, %v197
    %v199 = vshll.u32 2131351028, %v190
    %v200 = vshrl.u32 2102212464, %v191
    %v201 = vor.u32 %v199, %v200
    %v202 = vshll.u32 2102212464, %v190
    %v203 = vshrl.u32 920167782, %v191
    %v204 = vor.u32 %v202, %v203
    %v205 = vshll.u32 920167782, %v190
    %v206 = vshrl.u32 1326507024, %v191
    %v207 = vor.u32 %v205, %v206
    %vm208 = vcmp.lt.s32.totalorder %v189, 1
    %vm209 = vcmp.lt.s32.totalorder %v189, 2
    %vm210 = vcmp.lt.s32.totalorder %v189, 3
    %vm211 = vcmp.lt.s32.totalorder %v189, 4
    %v212 = vsel %vm208, %v192, %v195
    %v213 = vsel %vm211, %v201, 2102212464
    %v214 = vsel %vm210, %v198, %v213
    %v215 = vsel %vm209, %v212, %v214
    %v216 = vsel %vm208, %v195, %v198
    %v217 = vsel %vm211, %v204, 920167782
    %v218 = vsel %vm210, %v201, %v217
    %v219 = vsel %vm209, %v216, %v218
    %v220 = vsel %vm208, %v198, %v201
    %v221 = vsel %vm211, %v207, 1326507024
    %v222 = vsel %vm210, %v204, %v221
    %v223 = vsel %vm209, %v220, %v222
    %v224 = vshll.u32 %v184, 8
    %v225 = vmul.u32.u64.compose %v224, %v223
    %v226 = vextract.low.u32 %v225
    %v227 = vextract.high.u32 %v225
    %v228 = vmul.u32.u64.compose %v224, %v219
    %v229 = vextract.low.u32 %v228
    %v230 = vextract.high.u32 %v228
    %v231 = vmul.u32 %v224, %v215
    %v232 = vadd.s32 %v227, %v229
    %vm233 = vc.u32 %v227, %v229
    %v234 = vadd.s32 %v230, 1
    %v235 = vsel %vm233, %v234, %v230
    %v236 = vadd.s32 %v231, %v235
    %v237 = vadd.s32 %v236, 536870912
    %v238 = vshrl.u32 %v237, 30
    %v239 = vshll.u32 %v238, 30
    %v240 = vsub.s32 %v236, %v239
    %vm241 = vcmp.lt.s32.totalorder %v240, 0
    %v242 = vsub.s32 0, %v240
    %v243 = vsel %vm241, %v242, %v240
    %v244 = vclz %v243
    %v245 = vsub.s32 %v244, 2
    %vm246 = vcmp.gt.s32.totalorder 0, %v245
    %v247 = vsel %vm246, 0, %v245
    %v248 = vsub.s32 32, %v247
    %v249 = vshll.u32 %v240, %v247
    %v250 = vshrl.u32 %v232, %v248
    %v251 = vor.u32 %v249, %v250
    %v252 = vsub.s32 4294967266, %v247
    %v253 = vadd.s32 %v252, 127
    %v254 = vshll.u32 %v253, 23
    %v255 = vor.u32 4788187, %v254
    %v256 = vand.u32 2147483647, %v255
    %v258 = vcvt.s32.f32 %v251
    %v259 = vmul.f32 %v258, %v256
    %v260 = vxor.u32 %v259, 2147483648
    %v261 = vsel %vm178, %v260, %v259
    %v262 = vsub.s32 4, %v238
    %v263 = vsel %vm178, %v262, %v238
    %v264 = vsel %vm177, %v70, %v261
    %v265 = vsel %vm177, 0, %v263
    %v266 = vcosq.f32.pop %v264
    %v267 = vsinq.f32.pop %v264
    %vm268 = vweird.f32 %v70
    %v269 = vadd.s32 %v265, 3
    %v270 = vand.u32 %v269, 3
    %vm271 = vcmp.lt.s32.totalorder %v270, 2
    %vm272 = vcmp.eq.s32.totalorder %v270, 0
    %v273 = vxor.u32 %v267, 2147483648
    %v274 = vsel %vm272, %v266, %v273
    %vm275 = vcmp.eq.s32.totalorder %v270, 2
    %v276 = vxor.u32 %v266, 2147483648
    %v277 = vsel %vm275, %v276, %v267
    %v278 = vsel %vm271, %v274, %v277
    %v279 = vsel %vm268, nan, %v278
    %v280 = vsel %vm72, %v175, %v279
    %281 = vst [vmem:[#allocation5] sm:$0x1] %v280
    // Predicated region
    $region14: #{tpu_custom_call.1} parent=1 // pred_check
      _
    $region15: #{tpu_custom_call.1} parent=1 // pred_check_branch
      %283 = sbr.rel (0) target = $region17
    $region16: #{tpu_custom_call.1} parent=1 // pred_region
      %s285 = ssub.s32 16, 16
      %286 = vsyncadd [#allocation4], %s285
      %s288 = sshll.u32 [#allocation5], 4
      %s289 = int_to_ptr.vmem [resolvable:$true] %s288
      %291 = dma.vmem_to_hbm [thread:$0]  %s289, 16, %s2, [#allocation4]
    $region17: #{tpu_custom_call.1} parent=1 // pred_fallthru
      _
    // Predicated region
    $region18: #{tpu_custom_call.1} parent=1 // pred_check
      _
    $region19: #{tpu_custom_call.1} parent=1 // pred_check_branch
      %293 = sbr.rel (0) target = $region21
    $region20: #{tpu_custom_call.1} parent=1 // pred_region
      %294 = dma.done [#allocation4], 16
    $region21: #{tpu_custom_call.1} parent=1 // pred_fallthru
      _
    %295 = vsyncpa [#allocation3], 1
    %296 = vsyncpa [#allocation4], 1

</llo_original>
